<compile_context>
chip_gen: v7x
topology: tpu7x:2x2x1
jax: 0.10.0
libtpu: 0.0.40
codegen_flags: <defaults>
</compile_context>

<pallas_src>
import functools

import jax
import jax.numpy as jnp
from jax.experimental import pallas as pl
from jax.experimental.pallas import tpu as pltpu

LN_EPS = 1e-5  # PyTorch nn.LayerNorm default


def _round_up(x: int, m: int) -> int:
    return ((x + m - 1) // m) * m


def _cdiv(a: int, b: int) -> int:
    return -(-a // b)


def _vmem_limit_bytes() -> int:
    # Raise the scoped VMEM limit above the 16/32 MiB defaults while leaving
    # headroom below physical capacity (64 MiB on v7x, 128 MiB on v5e/v6e).
    try:
        cap = pltpu.get_tpu_info().vmem_capacity_bytes
    except Exception:
        cap = 64 << 20
    return min(100 << 20, int(cap * 0.85))


def _ln_epilogue(h_f32, res, p_ref, o_ref, hidden: int):
    """bias + dropout(identity) + residual + LayerNorm, all in f32."""
    bias = p_ref[0:1, :].astype(jnp.float32)
    gamma = p_ref[1:2, :].astype(jnp.float32)
    beta = p_ref[2:3, :].astype(jnp.float32)

    h = h_f32 + bias + res.astype(jnp.float32)

    # Padded lanes of h are exactly zero (zero-padded weight columns, bias,
    # residual), so sums over Hp equal sums over the true hidden size H and
    # no lane mask is needed.  Fused sum / sum-of-squares keeps the XLU feeds
    # independent and removes the iota+select filler of the old version.
    inv_h = jnp.float32(1.0 / hidden)
    mean = jnp.sum(h, axis=-1, keepdims=True) * inv_h
    var = jnp.sum(h * h, axis=-1, keepdims=True) * inv_h - mean * mean
    var = jnp.maximum(var, 0.0)  # guard mild f32 cancellation
    normed = (h - mean) * jax.lax.rsqrt(var + LN_EPS)
    o_ref[...] = (normed * gamma + beta).astype(o_ref.dtype)


def _resident_kernel(x_ref, res_ref, w_ref, p_ref, o_ref, *, hidden: int):
    # x_ref/res_ref: (tm, Hp); w_ref: (Hp, Hp) pre-transposed (x @ W);
    # p_ref: (3, Hp) = [bias; gamma; beta]; o_ref: (tm, Hp)
    h = jnp.dot(x_ref[...], w_ref[...], preferred_element_type=jnp.float32)
    _ln_epilogue(h, res_ref[...], p_ref, o_ref, hidden)


def _ktiled_kernel(x_ref, res_ref, w_ref, p_ref, o_ref, acc_ref, *, hidden: int):
    # Grid = (row_tiles, K_tiles); x_ref: (tm, tk); w_ref: (tk, Hp);
    # res_ref/o_ref: (tm, Hp); acc_ref: (tm, Hp) f32 scratch.
    k = pl.program_id(1)

    @pl.when(k == 0)
    def _():
        acc_ref[...] = jnp.zeros_like(acc_ref)

    acc_ref[...] += jnp.dot(x_ref[...], w_ref[...],
                            preferred_element_type=jnp.float32)

    @pl.when(k == pl.num_programs(1) - 1)
    def _():
        _ln_epilogue(acc_ref[...], res_ref[...], p_ref, o_ref, hidden)


def _fit_tm(tm: int, Hp: int, act_itemsize: int, weight_bytes: int,
            budget: int) -> int:
    """Shrink the row tile until double-buffered activations + weight fit."""
    while tm > 64:
        act = 2 * 3 * tm * Hp * act_itemsize + tm * Hp * 4  # x/res/out + f32 h
        if act + weight_bytes <= budget:
            break
        tm //= 2
    return tm


def transformer_output(hidden_states, input_tensor, w, b, gamma, beta, *,
                       tm: int = 512, tk: int = 512,
                       force_ktiled: bool = False, matmul_dtype=None):
    """Fused Linear + dropout(identity) + residual + LayerNorm.

    hidden_states, input_tensor: [..., H]
    w: [H, H] stored so the op is x @ w (== PyTorch x @ W_pt.T)
    b, gamma, beta: [H]
    """
    orig_shape = hidden_states.shape
    H = orig_shape[-1]
    x2d = hidden_states.reshape(-1, H)
    r2d = input_tensor.reshape(-1, H)
    N = x2d.shape[0]

    Hp = _round_up(H, 128)                       # lane-dense hidden axis
    pad_lanes = Hp - H

    act_itemsize = jnp.dtype(x2d.dtype).itemsize
    w_itemsize = jnp.dtype(w.dtype).itemsize
    weight_bytes = Hp * Hp * w_itemsize
    vmem_limit = _vmem_limit_bytes()
    budget = int(vmem_limit * 0.8)

    # Path selection: keep the whole weight resident unless it is too big for
    # the smallest-VMEM generation (v7x: 64 MiB physical / ~54 MiB scoped).
    use_ktiled = force_ktiled or weight_bytes > (24 << 20)

    if use_ktiled:
        # K tile: largest multiple of 128 <= tk that divides Hp.
        tk_eff = max(128, (min(tk, Hp) // 128) * 128)
        while Hp % tk_eff:
            tk_eff -= 128
        resident_w_bytes = 2 * tk_eff * Hp * w_itemsize   # double-buffered stream
    else:
        tk_eff = Hp
        single_buffer_weight = weight_bytes >= (4 << 20)
        resident_w_bytes = (1 if single_buffer_weight else 2) * weight_bytes

    tm = _fit_tm(tm, Hp, act_itemsize, resident_w_bytes, budget)

    # Balance the last row tile instead of hard-padding up to tm.
    n_row_tiles = _cdiv(N, tm)
    tm_eff = _round_up(_cdiv(N, n_row_tiles), 8)
    Np = tm_eff * n_row_tiles
    pad_rows = Np - N

    # Only pad when actually required (avoids extra HBM round-trips when
    # H % 128 == 0 and N is already a tile multiple).
    if pad_rows or pad_lanes:
        x_p = jnp.pad(x2d, ((0, pad_rows), (0, pad_lanes)))
        r_p = jnp.pad(r2d, ((0, pad_rows), (0, pad_lanes)))
    else:
        x_p, r_p = x2d, r2d
    if pad_lanes:
        w_p = jnp.pad(w, ((0, pad_lanes), (0, pad_lanes)))
        params = jnp.pad(jnp.stack([b, gamma, beta]), ((0, 0), (0, pad_lanes)))
    else:
        w_p = w
        params = jnp.stack([b, gamma, beta])
    # TODO(synk): in a real model, pre-pad/cast w_p and params once at weight
    # load time instead of per call.

    if matmul_dtype is not None:
        x_p = x_p.astype(matmul_dtype)
        w_p = w_p.astype(matmul_dtype)

    cost = pl.CostEstimate(
        flops=2 * Np * Hp * Hp,
        bytes_accessed=(3 * Np * Hp) * act_itemsize + (Hp * Hp + 3 * Hp) * w_itemsize,
        transcendentals=Np,  # one rsqrt per row
    )

    out_shape = jax.ShapeDtypeStruct((Np, Hp), hidden_states.dtype)

    if not use_ktiled:
        # ---- resident-weight path -----------------------------------------
        if single_buffer_weight:
            # Grid-invariant operands: single-buffer the big weight so v7x's
            # 64 MiB VMEM is not spent on a second, never-used copy.
            w_spec = pl.BlockSpec((Hp, Hp), lambda i: (0, 0),
                                  pipeline_mode=pl.Buffered(1))
            p_spec = pl.BlockSpec((3, Hp), lambda i: (0, 0),
                                  pipeline_mode=pl.Buffered(1))
        else:
            w_spec = pl.BlockSpec((Hp, Hp), lambda i: (0, 0))
            p_spec = pl.BlockSpec((3, Hp), lambda i: (0, 0))

        out = pl.pallas_call(
            functools.partial(_resident_kernel, hidden=H),
            out_shape=out_shape,
            grid_spec=pltpu.PrefetchScalarGridSpec(
                num_scalar_prefetch=0,
                grid=(Np // tm_eff,),
                in_specs=[
                    pl.BlockSpec((tm_eff, Hp), lambda i: (i, 0)),  # x rows
                    pl.BlockSpec((tm_eff, Hp), lambda i: (i, 0)),  # residual rows
                    w_spec,                                        # weight
                    p_spec,                                        # [bias;gamma;beta]
                ],
                out_specs=pl.BlockSpec((tm_eff, Hp), lambda i: (i, 0)),
            ),
            compiler_params=pltpu.CompilerParams(
                dimension_semantics=("parallel",),
                vmem_limit_bytes=vmem_limit,
            ),
            cost_estimate=cost,
        )(x_p, r_p, w_p, params)
    else:
        # ---- K-tiled path (large hidden) ----------------------------------
        out = pl.pallas_call(
            functools.partial(_ktiled_kernel, hidden=H),
            out_shape=out_shape,
            grid_spec=pltpu.PrefetchScalarGridSpec(
                num_scalar_prefetch=0,
                grid=(Np // tm_eff, Hp // tk_eff),
                in_specs=[
                    pl.BlockSpec((tm_eff, tk_eff), lambda i, k: (i, k)),  # x
                    pl.BlockSpec((tm_eff, Hp), lambda i, k: (i, 0)),      # residual
                    pl.BlockSpec((tk_eff, Hp), lambda i, k: (k, 0)),      # weight stream
                    pl.BlockSpec((3, Hp), lambda i, k: (0, 0)),           # params
                ],
                out_specs=pl.BlockSpec((tm_eff, Hp), lambda i, k: (i, 0)),
                scratch_shapes=[pltpu.VMEM((tm_eff, Hp), jnp.float32)],
            ),
            compiler_params=pltpu.CompilerParams(
                dimension_semantics=("parallel", "arbitrary"),
                vmem_limit_bytes=vmem_limit,
            ),
            cost_estimate=cost,
        )(x_p, r_p, w_p, params)

    if pad_rows or pad_lanes:
        out = out[:N, :H]
    return out.reshape(orig_shape)


if __name__ == "__main__":
    key = jax.random.PRNGKey(0)

    def make_case(batch, seq, hidden, k):
        k1, k2, k3, k4 = jax.random.split(k, 4)
        hs = jax.random.normal(k1, (batch, seq, hidden), dtype=jnp.float32)
        res = jax.random.normal(k2, (batch, seq, hidden), dtype=jnp.float32)
        # nn.Linear(H, H) weight stored [in, out] so kernel does x @ w.
        w = jax.random.normal(k3, (hidden, hidden), dtype=jnp.float32) * 0.02
        b = jax.random.normal(k4, (hidden,), dtype=jnp.float32) * 0.02
        gamma = jnp.ones((hidden,), dtype=jnp.float32)
        beta = jnp.zeros((hidden,), dtype=jnp.float32)
        return hs, res, w, b, gamma, beta

    def reference(hs, res, w, b, gamma, beta):
        h = hs @ w + b + res
        mean = h.mean(axis=-1, keepdims=True)
        var = ((h - mean) ** 2).mean(axis=-1, keepdims=True)
        return (h - mean) * jax.lax.rsqrt(var + LN_EPS) * gamma + beta

    k1, k2 = jax.random.split(key)

    # Case 1: small shapes consistent with the module (batch=2, seq=8, H=32);
    # exercises the resident-weight path.
    hs, res, w, b, gamma, beta = make_case(2, 8, 32, k1)
    out = transformer_output(hs, res, w, b, gamma, beta)
    jax.block_until_ready(out)
    ref = reference(hs, res, w, b, gamma, beta)
    assert out.shape == hs.shape
    assert jnp.allclose(out, ref, atol=1e-4, rtol=1e-4), "resident path mismatch"

    # Case 2: still-small ragged shapes that force the K-tiled accumulator
    # path (the large-H configuration on v7x), to validate that path too.
    hs, res, w, b, gamma, beta = make_case(1, 24, 256, k2)
    out = transformer_output(hs, res, w, b, gamma, beta,
                             force_ktiled=True, tk=128)
    jax.block_until_ready(out)
    ref = reference(hs, res, w, b, gamma, beta)
    assert jnp.allclose(out, ref, atol=1e-4, rtol=1e-4), "K-tiled path mismatch"

    print("KERNEL_OK")
</pallas_src>

<mosaic_0001>
module attributes {stable_mosaic.version = 11 : i64} {
  func.func @_resident_kernel(%arg0: i32, %arg1: memref<16x128xf32, #tpu.memory_space<vmem>>, %arg2: memref<16x128xf32, #tpu.memory_space<vmem>>, %arg3: memref<128x128xf32, #tpu.memory_space<vmem>>, %arg4: memref<3x128xf32, #tpu.memory_space<vmem>>, %arg5: memref<16x128xf32, #tpu.memory_space<vmem>>) attributes {dimension_semantics = [#tpu.dimension_semantics<parallel>], iteration_bounds = array<i64: 1>, scalar_prefetch = 0 : i64, scratch_operands = 0 : i64, tpu.core_type = #tpu.core_type<tc>, window_params = [{transform_indices = @transform_0, window_bounds = array<i64: 16, 128>}, {transform_indices = @transform_1, window_bounds = array<i64: 16, 128>}, {pipeline_mode = #tpu.pipeline_mode<synchronous>, transform_indices = @transform_2, window_bounds = array<i64: 128, 128>}, {pipeline_mode = #tpu.pipeline_mode<synchronous>, transform_indices = @transform_3, window_bounds = array<i64: 3, 128>}, {transform_indices = @transform_4, window_bounds = array<i64: 16, 128>}]} {
    %c0 = arith.constant 0 : index
    %c0_0 = arith.constant 0 : index
    %0 = vector.load %arg1[%c0, %c0_0] : memref<16x128xf32, #tpu.memory_space<vmem>>, vector<16x128xf32>
    %c0_1 = arith.constant 0 : index
    %c0_2 = arith.constant 0 : index
    %1 = vector.load %arg3[%c0_1, %c0_2] : memref<128x128xf32, #tpu.memory_space<vmem>>, vector<128x128xf32>
    %cst = arith.constant dense<0.000000e+00> : vector<16x128xf32>
    %2 = tpu.matmul %0, %1, %cst {dimension_numbers = #tpu.dot_dimension_numbers<[1], [0], [0], [1], [0, 0, 1, 1], [], []>} : vector<16x128xf32>, vector<128x128xf32>, vector<16x128xf32> -> vector<16x128xf32>
    %c0_3 = arith.constant 0 : index
    %c0_4 = arith.constant 0 : index
    %3 = vector.load %arg2[%c0_3, %c0_4] : memref<16x128xf32, #tpu.memory_space<vmem>>, vector<16x128xf32>
    %c0_5 = arith.constant 0 : index
    %c0_6 = arith.constant 0 : index
    %4 = vector.load %arg4[%c0_5, %c0_6] : memref<3x128xf32, #tpu.memory_space<vmem>>, vector<1x128xf32>
    %c1 = arith.constant 1 : index
    %c0_7 = arith.constant 0 : index
    %5 = vector.load %arg4[%c1, %c0_7] : memref<3x128xf32, #tpu.memory_space<vmem>>, vector<1x128xf32>
    %c2 = arith.constant 2 : index
    %c0_8 = arith.constant 0 : index
    %6 = vector.load %arg4[%c2, %c0_8] : memref<3x128xf32, #tpu.memory_space<vmem>>, vector<1x128xf32>
    %7 = vector.broadcast %4 : vector<1x128xf32> to vector<16x128xf32>
    %8 = arith.addf %2, %7 : vector<16x128xf32>
    %9 = arith.addf %8, %3 : vector<16x128xf32>
    %cst_9 = arith.constant dense<0.000000e+00> : vector<16xf32>
    %10 = vector.multi_reduction <add>, %9, %cst_9 [1] : vector<16x128xf32> to vector<16xf32>
    %11 = vector.shape_cast %10 : vector<16xf32> to vector<16x1xf32>
    %cst_10 = arith.constant 3.125000e-02 : f32
    %12 = vector.broadcast %cst_10 : f32 to vector<16x1xf32>
    %13 = arith.mulf %11, %12 : vector<16x1xf32>
    %14 = arith.mulf %9, %9 : vector<16x128xf32>
    %cst_11 = arith.constant dense<0.000000e+00> : vector<16xf32>
    %15 = vector.multi_reduction <add>, %14, %cst_11 [1] : vector<16x128xf32> to vector<16xf32>
    %16 = vector.shape_cast %15 : vector<16xf32> to vector<16x1xf32>
    %cst_12 = arith.constant 3.125000e-02 : f32
    %17 = vector.broadcast %cst_12 : f32 to vector<16x1xf32>
    %18 = arith.mulf %16, %17 : vector<16x1xf32>
    %19 = arith.mulf %13, %13 : vector<16x1xf32>
    %20 = arith.subf %18, %19 : vector<16x1xf32>
    %cst_13 = arith.constant 0.000000e+00 : f32
    %21 = vector.broadcast %cst_13 : f32 to vector<16x1xf32>
    %22 = arith.maximumf %20, %21 : vector<16x1xf32>
    %23 = vector.broadcast %13 : vector<16x1xf32> to vector<16x128xf32>
    %24 = arith.subf %9, %23 : vector<16x128xf32>
    %cst_14 = arith.constant 9.99999974E-6 : f32
    %25 = vector.broadcast %cst_14 : f32 to vector<16x1xf32>
    %26 = arith.addf %22, %25 : vector<16x1xf32>
    %27 = math.rsqrt %26 : vector<16x1xf32>
    %28 = vector.broadcast %27 : vector<16x1xf32> to vector<16x128xf32>
    %29 = arith.mulf %24, %28 : vector<16x128xf32>
    %30 = vector.broadcast %5 : vector<1x128xf32> to vector<16x128xf32>
    %31 = arith.mulf %29, %30 : vector<16x128xf32>
    %32 = vector.broadcast %6 : vector<1x128xf32> to vector<16x128xf32>
    %33 = arith.addf %31, %32 : vector<16x128xf32>
    %c0_15 = arith.constant 0 : index
    %c0_16 = arith.constant 0 : index
    %34 = vector.load %arg5[%c0_15, %c0_16] : memref<16x128xf32, #tpu.memory_space<vmem>>, vector<16x128xf32>
    tpu.vector_store %arg5[%c0_15, %c0_16], %33 {strides = array<i32>} : memref<16x128xf32, #tpu.memory_space<vmem>>, vector<16x128xf32>,
    return
  }
  func.func @transform_0(%arg0: i32) -> (i32, i32) {
    %c0_i32 = arith.constant 0 : i32
    %c0_i32_0 = arith.constant 0 : i32
    return %arg0, %c0_i32 : i32, i32
  }
  func.func @transform_1(%arg0: i32) -> (i32, i32) {
    %c0_i32 = arith.constant 0 : i32
    %c0_i32_0 = arith.constant 0 : i32
    return %arg0, %c0_i32 : i32, i32
  }
  func.func @transform_2(%arg0: i32) -> (i32, i32) {
    %c0_i32 = arith.constant 0 : i32
    %c0_i32_0 = arith.constant 0 : i32
    %c0_i32_1 = arith.constant 0 : i32
    return %c0_i32, %c0_i32_0 : i32, i32
  }
  func.func @transform_3(%arg0: i32) -> (i32, i32) {
    %c0_i32 = arith.constant 0 : i32
    %c0_i32_0 = arith.constant 0 : i32
    %c0_i32_1 = arith.constant 0 : i32
    return %c0_i32, %c0_i32_0 : i32, i32
  }
  func.func @transform_4(%arg0: i32) -> (i32, i32) {
    %c0_i32 = arith.constant 0 : i32
    %c0_i32_0 = arith.constant 0 : i32
    return %arg0, %c0_i32 : i32, i32
  }
}

</mosaic_0001>

<llo_original>
// kernel: tpu_custom_call.1
$region0: #{tpu_custom_call.1}
  #allocation0 [shape = 'u32[]', space=smem, size = 0x4, offset = 0x4, fixed_abs, tag = 'smem constant byte address 0x4 - core index']
  #allocation1 [shape = 'u32[144,128]{1,0:T(1,128)}', space=vmem, size = 0x12000, scoped, tag = 'internal scratch']
  %s0 = inlined_call_operand.hbm [shape: f32[16,128], index: 0, kind: input, shape index: {}]
  %s1 = inlined_call_operand.hbm [shape: f32[16,128], index: 1, kind: input, shape index: {}]
  %s2 = inlined_call_operand.hbm [shape: f32[128,128], index: 2, kind: input, shape index: {}]
  %s3 = inlined_call_operand.vmem [shape: f32[3,128], index: 3, kind: input, shape index: {}]
  %s4 = inlined_call_operand.hbm [shape: f32[16,128], index: 4, kind: output, shape index: {}]
  %s5 = sld [smem:[#allocation0]]
  $region38: #{tpu_custom_call.1} parent=0
    _
  %s7 = ssub.s32 1, %s5
  %s8 = scalar_select 0, %s7, %s5
  $region1: #{tpu_custom_call.1} parent=0
    #allocation2 [shape = 'u8[8192]{0}', space=vmem, size = 0x2000, scoped, tag = 'input window, operand 0, single buffered']
    #allocation3 [shape = 's32[1]{0}', space=sflag, size = 0x4, scoped, tag = 'scoped memory for tpu_custom_call.1']
    #allocation4 [shape = 's32[1]{0}', space=sflag, size = 0x4, scoped, tag = 'scoped memory for tpu_custom_call.1']
    #allocation5 [shape = 'u8[8192]{0}', space=vmem, size = 0x2000, scoped, tag = 'input window, operand 1, single buffered']
    #allocation6 [shape = 's32[1]{0}', space=sflag, size = 0x4, scoped, tag = 'scoped memory for tpu_custom_call.1']
    #allocation7 [shape = 'u8[65536]{0}', space=vmem, size = 0x10000, scoped, tag = 'input window, operand 2, single buffered']
    #allocation8 [shape = 'u8[8192]{0}', space=vmem, size = 0x2000, scoped, tag = 'output window, operand 0, single buffered']
    %9 = vsyncpa [#allocation3], 0
    %10 = vsyncpa [#allocation6], 0
    %11 = vsyncpa [#allocation4], 0
    // Predicated region
    $region2: #{tpu_custom_call.1} parent=1 // pred_check
      _
    $region3: #{tpu_custom_call.1} parent=1 // pred_check_branch
      %13 = sbr.rel (0) target = $region5
    $region4: #{tpu_custom_call.1} parent=1 // pred_region
      %s15 = ssub.s32 256, 256
      %16 = vsyncadd [#allocation3], %s15
      %s17 = sshll.u32 [#allocation2], 4
      %s18 = int_to_ptr.vmem [resolvable:$true] %s17
      %23 = dma.hbm_to_vmem [thread:$0]  %s0, 256, %s18, [#allocation3], 128, 128, 8
    $region5: #{tpu_custom_call.1} parent=1 // pred_fallthru
      _
    // Predicated region
    $region6: #{tpu_custom_call.1} parent=1 // pred_check
      _
    $region7: #{tpu_custom_call.1} parent=1 // pred_check_branch
      %25 = sbr.rel (0) target = $region9
    $region8: #{tpu_custom_call.1} parent=1 // pred_region
      %s27 = ssub.s32 256, 256
      %28 = vsyncadd [#allocation6], %s27
      %s29 = sshll.u32 [#allocation5], 4
      %s30 = int_to_ptr.vmem [resolvable:$true] %s29
      %35 = dma.hbm_to_vmem [thread:$0]  %s1, 256, %s30, [#allocation6], 128, 128, 8
    $region9: #{tpu_custom_call.1} parent=1 // pred_fallthru
      _
    // Predicated region
    $region10: #{tpu_custom_call.1} parent=1 // pred_check
      _
    $region11: #{tpu_custom_call.1} parent=1 // pred_check_branch
      %37 = sbr.rel (0) target = $region13
    $region12: #{tpu_custom_call.1} parent=1 // pred_region
      %s39 = ssub.s32 2048, 2048
      %40 = vsyncadd [#allocation6], %s39
      %s41 = sshll.u32 [#allocation7], 4
      %s42 = int_to_ptr.vmem [resolvable:$true] %s41
      %47 = dma.hbm_to_vmem [thread:$0]  %s2, 2048, %s42, [#allocation6], 128, 128, 8
    $region13: #{tpu_custom_call.1} parent=1 // pred_fallthru
      _
    // Predicated region
    $region14: #{tpu_custom_call.1} parent=1 // pred_check
      _
    $region15: #{tpu_custom_call.1} parent=1 // pred_check_branch
      %49 = sbr.rel (0) target = $region17
    $region16: #{tpu_custom_call.1} parent=1 // pred_region
      _
    $region17: #{tpu_custom_call.1} parent=1 // pred_fallthru
      _
    // Predicated region
    $region18: #{tpu_custom_call.1} parent=1 // pred_check
      _
    $region19: #{tpu_custom_call.1} parent=1 // pred_check_branch
      %51 = sbr.rel (0) target = $region21
    $region20: #{tpu_custom_call.1} parent=1 // pred_region
      %52 = dma.done [#allocation3], 256
    $region21: #{tpu_custom_call.1} parent=1 // pred_fallthru
      _
    // Predicated region
    $region22: #{tpu_custom_call.1} parent=1 // pred_check
      _
    $region23: #{tpu_custom_call.1} parent=1 // pred_check_branch
      %54 = sbr.rel (0) target = $region25
    $region24: #{tpu_custom_call.1} parent=1 // pred_region
      %55 = dma.done [#allocation6], 256
    $region25: #{tpu_custom_call.1} parent=1 // pred_fallthru
      _
    // Predicated region
    $region26: #{tpu_custom_call.1} parent=1 // pred_check
      _
    $region27: #{tpu_custom_call.1} parent=1 // pred_check_branch
      %57 = sbr.rel (0) target = $region29
    $region28: #{tpu_custom_call.1} parent=1 // pred_region
      %58 = dma.done [#allocation6], 2048
    $region29: #{tpu_custom_call.1} parent=1 // pred_fallthru
      _
    %v59 = vld [vmem:[#allocation2] sm:$0xff]
    %v60 = vld [vmem:[#allocation2 + $0x8] sm:$0xff]
    %v61 = vld [vmem:[#allocation7] sm:$0xff]
    %v62 = vld [vmem:[#allocation7 + $0x8] sm:$0xff]
    %v63 = vld [vmem:[#allocation7 + $0x10] sm:$0xff]
    %v64 = vld [vmem:[#allocation7 + $0x18] sm:$0xff]
    %v65 = vld [vmem:[#allocation7 + $0x20] sm:$0xff]
    %v66 = vld [vmem:[#allocation7 + $0x28] sm:$0xff]
    %v67 = vld [vmem:[#allocation7 + $0x30] sm:$0xff]
    %v68 = vld [vmem:[#allocation7 + $0x38] sm:$0xff]
    %v69 = vld [vmem:[#allocation7 + $0x40] sm:$0xff]
    %v70 = vld [vmem:[#allocation7 + $0x48] sm:$0xff]
    %v71 = vld [vmem:[#allocation7 + $0x50] sm:$0xff]
    %v72 = vld [vmem:[#allocation7 + $0x58] sm:$0xff]
    %v73 = vld [vmem:[#allocation7 + $0x60] sm:$0xff]
    %v74 = vld [vmem:[#allocation7 + $0x68] sm:$0xff]
    %v75 = vld [vmem:[#allocation7 + $0x70] sm:$0xff]
    %v76 = vld [vmem:[#allocation7 + $0x78] sm:$0xff]
    %v77 = vld [vmem:[#allocation5] sm:$0xff]
    %v78 = vld [vmem:[#allocation5 + $0x8] sm:$0xff]
    %v79 = vld [vmem:[%s3] sm:$0x1]
    %v80 = vld [vmem:[%s3 + $0x1] sm:$0x1]
    %v81 = vld [vmem:[%s3 + $0x2] sm:$0x1]
    %v82 = vlaneseq
    %v83 = vshrl.u32 %v82, 7
    %v84 = vsub.s32 0, %v83
    %v85 = vrot.slane %v79, %v84
    %86 = vmatprep.subr.mxu0 0.0
    %87 = vmatpush1.msra.mxu0 %v61
    %88 = vmatprep.subr.mxu0 0.0
    %89 = vmatpush1.msra.mxu0 %v62
    %90 = vmatprep.subr.mxu0 0.0
    %91 = vmatpush1.msra.mxu0 %v63
    %92 = vmatprep.subr.mxu0 0.0
    %93 = vmatpush1.msra.mxu0 %v64
    %94 = vmatprep.subr.mxu0 0.0
    %95 = vmatpush1.msra.mxu0 %v65
    %96 = vmatprep.subr.mxu0 0.0
    %97 = vmatpush1.msra.mxu0 %v66
    %98 = vmatprep.subr.mxu0 0.0
    %99 = vmatpush1.msra.mxu0 %v67
    %100 = vmatprep.subr.mxu0 0.0
    %101 = vmatpush1.msra.mxu0 %v68
    %102 = vmatprep.subr.mxu0 0.0
    %103 = vmatpush1.msra.mxu0 %v69
    %104 = vmatprep.subr.mxu0 0.0
    %105 = vmatpush1.msra.mxu0 %v70
    %106 = vmatprep.subr.mxu0 0.0
    %107 = vmatpush1.msra.mxu0 %v71
    %108 = vmatprep.subr.mxu0 0.0
    %109 = vmatpush1.msra.mxu0 %v72
    %110 = vmatprep.subr.mxu0 0.0
    %111 = vmatpush1.msra.mxu0 %v73
    %112 = vmatprep.subr.mxu0 0.0
    %113 = vmatpush1.msra.mxu0 %v74
    %114 = vmatprep.subr.mxu0 0.0
    %115 = vmatpush1.msra.mxu0 %v75
    %116 = vmatprep.subr.mxu0 0.0
    %117 = vmatpush1.msra.mxu0 %v76
    %118 = vmatprep.subr.mxu0 0.0
    %119 = vmatpush1.msra.mxu0 0.0
    %120 = vmatprep.subr.mxu0 0.0
    %121 = vmatpush1.msra.mxu0 0.0
    %122 = vmatprep.subr.mxu0 0.0
    %123 = vmatpush1.msra.mxu0 0.0
    %124 = vmatprep.subr.mxu0 0.0
    %125 = vmatpush1.msra.mxu0 0.0
    %126 = vmatprep.subr.mxu0 0.0
    %127 = vmatpush1.msra.mxu0 0.0
    %128 = vmatprep.subr.mxu0 0.0
    %129 = vmatpush1.msra.mxu0 0.0
    %130 = vmatprep.subr.mxu0 0.0
    %131 = vmatpush1.msra.mxu0 0.0
    %132 = vmatprep.subr.mxu0 0.0
    %133 = vmatpush1.msra.mxu0 0.0
    %134 = vmatprep.subr.mxu0 0.0
    %135 = vmatpush1.msra.mxu0 0.0
    %136 = vmatprep.subr.mxu0 0.0
    %137 = vmatpush1.msra.mxu0 0.0
    %138 = vmatprep.subr.mxu0 0.0
    %139 = vmatpush1.msra.mxu0 0.0
    %140 = vmatprep.subr.mxu0 0.0
    %141 = vmatpush1.msra.mxu0 0.0
    %142 = vmatprep.subr.mxu0 0.0
    %143 = vmatpush1.msra.mxu0 0.0
    %144 = vmatprep.subr.mxu0 0.0
    %145 = vmatpush1.msra.mxu0 0.0
    %146 = vmatprep.subr.mxu0 0.0
    %147 = vmatpush1.msra.mxu0 0.0
    %148 = vmatprep.subr.mxu0 0.0
    %149 = vmatpush1.msra.mxu0 0.0
    %150 = vmatprep.mubr.f32.mxu0 0.0
    %151 = vmatmul.mubr.f32.gmra.mrb[0].mxu0 %v59
    %v152 = vpop.f32.mrb[0].mxu0
    %v153 = vadd.f32 %v85, %v152
    %v154 = vpop.f32.mrb[0].mxu0
    %155 = vmatprep.mubr.f32.mxu0 0.0
    %156 = vmatmul.mubr.f32.gmra.mrb[0].mxu0 %v60
    %v157 = vpop.f32.mrb[0].mxu0
    %v158 = vadd.f32 %v85, %v157
    %v159 = vpop.f32.mrb[0].mxu0
    %160 = vdwg.mxu0
    %v161 = vadd.f32 %v153, %v77
    %v162 = vadd.f32 %v158, %v78
    %163 = vadd.xlane.f32.xlu0 %v161
    %v164 = vpop.xlane.xlu0 %163
    %165 = vadd.xlane.f32.xlu0 %v162
    %v166 = vpop.xlane.xlu0 %165
    %v167 = vmul.f32 %v164, 0.03125
    %v168 = vmul.f32 %v166, 0.03125
    %v169 = vmul.f32 %v161, %v161
    %v170 = vmul.f32 %v162, %v162
    %171 = vadd.xlane.f32.xlu0 %v169
    %v172 = vpop.xlane.xlu0 %171
    %173 = vadd.xlane.f32.xlu0 %v170
    %v174 = vpop.xlane.xlu0 %173
    %v175 = vmul.f32 %v172, 0.03125
    %v176 = vmul.f32 %v174, 0.03125
    %v177 = vmul.f32 %v167, %v167
    %v178 = vmul.f32 %v168, %v168
    %v179 = vsub.f32 %v175, %v177
    %v180 = vsub.f32 %v176, %v178
    %v181 = vmax.f32 %v179, 0.0
    %v182 = vmax.f32 %v180, 0.0
    %v183 = vsub.f32 %v161, %v167
    %v184 = vsub.f32 %v162, %v168
    %v185 = vadd.f32 %v181, 1e-05
    %v186 = vadd.f32 %v182, 1e-05
    %v187 = vrsqrt.pop %v185
    %v188 = vrsqrt.pop %v186
    %v189 = vmul.f32 %v183, %v187
    %v190 = vmul.f32 %v184, %v188
    %v191 = vlaneseq
    %v192 = vshrl.u32 %v191, 7
    %v193 = vsub.s32 0, %v192
    %v194 = vrot.slane %v80, %v193
    %v195 = vmul.f32 %v189, %v194
    %v196 = vmul.f32 %v190, %v194
    %v197 = vlaneseq
    %v198 = vshrl.u32 %v197, 7
    %v199 = vsub.s32 0, %v198
    %v200 = vrot.slane %v81, %v199
    %v201 = vadd.f32 %v195, %v200
    %v202 = vadd.f32 %v196, %v200
    %203 = vst [vmem:[#allocation8] sm:$0xff] %v201
    %204 = vst [vmem:[#allocation8 + $0x8] sm:$0xff] %v202
    // Predicated region
    $region30: #{tpu_custom_call.1} parent=1 // pred_check
      _
    $region31: #{tpu_custom_call.1} parent=1 // pred_check_branch
      %206 = sbr.rel (0) target = $region33
    $region32: #{tpu_custom_call.1} parent=1 // pred_region
      %s208 = ssub.s32 256, 256
      %209 = vsyncadd [#allocation4], %s208
      %s210 = sshll.u32 [#allocation8], 4
      %s211 = int_to_ptr.vmem [resolvable:$true] %s210
      %216 = dma.vmem_to_hbm [thread:$0]  %s211, 256, %s4, [#allocation4], 128, 128, 8
    $region33: #{tpu_custom_call.1} parent=1 // pred_fallthru
      _
    // Predicated region
    $region34: #{tpu_custom_call.1} parent=1 // pred_check
      _
    $region35: #{tpu_custom_call.1} parent=1 // pred_check_branch
      %218 = sbr.rel (0) target = $region37
    $region36: #{tpu_custom_call.1} parent=1 // pred_region
      %219 = dma.done [#allocation4], 256
    $region37: #{tpu_custom_call.1} parent=1 // pred_fallthru
      _
    %220 = vsyncpa [#allocation3], 1
    %221 = vsyncpa [#allocation6], 1
    %222 = vsyncpa [#allocation4], 1

</llo_original>
